<compile_context>
chip_gen: v6e
topology: v6e:2x2x1
jax: 0.10.0
libtpu: 0.0.40
codegen_flags: <defaults>
</compile_context>

<pallas_src>
import jax
import jax.numpy as jnp
from jax.experimental import pallas as pl
from jax.experimental.pallas import tpu as pltpu


def decoder_kernel(x_ref, w1_ref, b1_ref, w2_ref, b2_ref, o_ref):
    # x arrives f32; cast to bf16 at the point of use (full-rate MXU operand).
    x_bf = x_ref[...].astype(jnp.bfloat16)
    # hidden = ReLU(x @ W1 + b1): bf16 MXU matmul, f32 accumulate, f32 VPU epilogue.
    h = jnp.dot(x_bf, w1_ref[...], preferred_element_type=jnp.float32)
    h = jnp.maximum(h + b1_ref[...], 0.0)
    # out = Sigmoid(h @ W2 + b2): cast h back to bf16 for the second MXU matmul.
    y = jnp.dot(h.astype(jnp.bfloat16), w2_ref[...],
                preferred_element_type=jnp.float32)
    y = y + b2_ref[...]
    # Sigmoid in f32 (EUP), single cast to bf16 on the store.
    o_ref[...] = jax.nn.sigmoid(y).astype(o_ref.dtype)


def _round_up(n, m):
    return ((n + m - 1) // m) * m


def _batch_tile(batch, *, single_tile_cap=2048, tm_max=1024):
    """Pick the batch tile size.

    - batch rounded to a sublane multiple fits one tile (<= single_tile_cap):
      use a single grid step (grid iterations are serial overhead on the
      single-TC v5e/v6e chips).
    - larger batches: at least 2 tiles of <= tm_max rows so v7x's two
      TensorCores both receive work via the "parallel" batch axis.
    """
    rounded = _round_up(batch, 8)
    if rounded <= single_tile_cap:
        return rounded
    return min(tm_max, _round_up(pl.cdiv(rounded, 2), 8))


def generator_forward(x, w1_bf, b1_f, w2_bf, b2_f, *, img_shape=(1, 16, 16)):
    """Fused decoder forward.

    Expects weights already cast (once, at parameter init):
        w1_bf, w2_bf : bfloat16 matmul operands
        b1_f,  b2_f  : float32 biases, shape (1, hidden) / (1, out_dim)
    x stays float32 and is cast to bf16 inside the kernel.
    Returns a bfloat16 NCHW image batch.
    """
    batch, latent = x.shape
    hidden = w1_bf.shape[1]
    out_dim = w2_bf.shape[1]
    assert out_dim == img_shape[0] * img_shape[1] * img_shape[2]

    tm = _batch_tile(batch)
    grid = (pl.cdiv(batch, tm),)

    cost = pl.CostEstimate(
        flops=2 * batch * (latent * hidden + hidden * out_dim),
        transcendentals=batch * out_dim,  # sigmoid
        bytes_accessed=(x.size * 4                # f32 x read
                        + w1_bf.size * 2 + w2_bf.size * 2
                        + b1_f.size * 4 + b2_f.size * 4
                        + batch * out_dim * 2),   # bf16 output write
    )

    flat = pl.pallas_call(
        decoder_kernel,
        out_shape=jax.ShapeDtypeStruct((batch, out_dim), jnp.bfloat16),
        grid_spec=pltpu.PrefetchScalarGridSpec(
            num_scalar_prefetch=0,
            grid=grid,
            in_specs=[
                pl.BlockSpec((tm, latent), lambda i: (i, 0)),       # x: tiled over batch
                pl.BlockSpec((latent, hidden), lambda i: (0, 0)),   # W1: VMEM-resident
                pl.BlockSpec((1, hidden), lambda i: (0, 0)),        # b1
                pl.BlockSpec((hidden, out_dim), lambda i: (0, 0)),  # W2: VMEM-resident
                pl.BlockSpec((1, out_dim), lambda i: (0, 0)),       # b2
            ],
            out_specs=pl.BlockSpec((tm, out_dim), lambda i: (i, 0)),
        ),
        compiler_params=pltpu.CompilerParams(
            dimension_semantics=("parallel",),   # independent batch tiles (megacore-friendly)
        ),
        cost_estimate=cost,
    )(x, w1_bf, b1_f, w2_bf, b2_f)

    # reshape to NCHW to mirror the PyTorch image convention (glue, not hot path)
    return flat.reshape((batch,) + img_shape)


def _ref_forward(x, w1, b1, w2, b2, img_shape=(1, 16, 16)):
    h = jnp.maximum(x @ w1 + b1, 0.0)
    y = jax.nn.sigmoid(h @ w2 + b2)
    return y.reshape((x.shape[0],) + img_shape)


if __name__ == "__main__":
    # Small, TPU-friendly shapes: batch=8, latent=32, hidden=128, image 1x16x16.
    batch, latent, hidden = 8, 32, 128
    img_shape = (1, 16, 16)
    out_dim = img_shape[0] * img_shape[1] * img_shape[2]  # 256

    key = jax.random.PRNGKey(0)
    kx, k1, k2, k3, k4 = jax.random.split(key, 5)

    x = jax.random.normal(kx, (batch, latent), dtype=jnp.float32)
    w1 = jax.random.normal(k1, (latent, hidden), dtype=jnp.float32) * 0.1
    b1 = jax.random.normal(k2, (1, hidden), dtype=jnp.float32) * 0.01
    w2 = jax.random.normal(k3, (hidden, out_dim), dtype=jnp.float32) * 0.1
    b2 = jax.random.normal(k4, (1, out_dim), dtype=jnp.float32) * 0.01

    # One-time parameter casts (hoisted out of the per-call path; in a real
    # training loop these live with the parameters, not with the forward call).
    w1_bf = w1.astype(jnp.bfloat16)
    w2_bf = w2.astype(jnp.bfloat16)
    b1_f = b1.astype(jnp.float32)
    b2_f = b2.astype(jnp.float32)

    out = generator_forward(x, w1_bf, b1_f, w2_bf, b2_f, img_shape=img_shape)
    out = jax.block_until_ready(out)

    ref = _ref_forward(x, w1, b1, w2, b2, img_shape)
    assert out.shape == (batch,) + img_shape, out.shape
    assert out.dtype == jnp.bfloat16, out.dtype
    # bf16 matmul operands + bf16 output vs f32 reference -> relaxed tolerance.
    assert jnp.allclose(out.astype(jnp.float32), ref, atol=3e-2, rtol=3e-2), \
        "mismatch vs reference"

    # TODO(synk): Generator.get_target uses host-side numpy RNG (training glue),
    # not part of forward(); intentionally not ported to the kernel.
    print("KERNEL_OK")
</pallas_src>

<mosaic_0001>
module attributes {stable_mosaic.version = 11 : i64} {
  func.func @decoder_kernel(%arg0: i32, %arg1: memref<8x32xf32, #tpu.memory_space<vmem>>, %arg2: memref<32x128xbf16, #tpu.memory_space<vmem>>, %arg3: memref<1x128xf32, #tpu.memory_space<vmem>>, %arg4: memref<128x256xbf16, #tpu.memory_space<vmem>>, %arg5: memref<1x256xf32, #tpu.memory_space<vmem>>, %arg6: memref<8x256xbf16, #tpu.memory_space<vmem>>) attributes {dimension_semantics = [#tpu.dimension_semantics<parallel>], iteration_bounds = array<i64: 1>, scalar_prefetch = 0 : i64, scratch_operands = 0 : i64, tpu.core_type = #tpu.core_type<tc>, window_params = [{transform_indices = @transform_0, window_bounds = array<i64: 8, 32>}, {pipeline_mode = #tpu.pipeline_mode<synchronous>, transform_indices = @transform_1, window_bounds = array<i64: 32, 128>}, {pipeline_mode = #tpu.pipeline_mode<synchronous>, transform_indices = @transform_2, window_bounds = array<i64: 1, 128>}, {pipeline_mode = #tpu.pipeline_mode<synchronous>, transform_indices = @transform_3, window_bounds = array<i64: 128, 256>}, {pipeline_mode = #tpu.pipeline_mode<synchronous>, transform_indices = @transform_4, window_bounds = array<i64: 1, 256>}, {transform_indices = @transform_5, window_bounds = array<i64: 8, 256>}]} {
    %c0 = arith.constant 0 : index
    %c0_0 = arith.constant 0 : index
    %0 = vector.load %arg1[%c0, %c0_0] : memref<8x32xf32, #tpu.memory_space<vmem>>, vector<8x32xf32>
    %1 = arith.truncf %0 : vector<8x32xf32> to vector<8x32xbf16>
    %c0_1 = arith.constant 0 : index
    %c0_2 = arith.constant 0 : index
    %2 = vector.load %arg2[%c0_1, %c0_2] : memref<32x128xbf16, #tpu.memory_space<vmem>>, vector<32x128xbf16>
    %cst = arith.constant dense<0.000000e+00> : vector<8x128xf32>
    %3 = tpu.matmul %1, %2, %cst {dimension_numbers = #tpu.dot_dimension_numbers<[1], [0], [0], [1], [0, 0, 1, 1], [], []>} : vector<8x32xbf16>, vector<32x128xbf16>, vector<8x128xf32> -> vector<8x128xf32>
    %c0_3 = arith.constant 0 : index
    %c0_4 = arith.constant 0 : index
    %4 = vector.load %arg3[%c0_3, %c0_4] : memref<1x128xf32, #tpu.memory_space<vmem>>, vector<1x128xf32>
    %5 = vector.broadcast %4 : vector<1x128xf32> to vector<8x128xf32>
    %6 = arith.addf %3, %5 : vector<8x128xf32>
    %cst_5 = arith.constant 0.000000e+00 : f32
    %7 = vector.broadcast %cst_5 : f32 to vector<8x128xf32>
    %8 = arith.maximumf %6, %7 : vector<8x128xf32>
    %9 = arith.truncf %8 : vector<8x128xf32> to vector<8x128xbf16>
    %c0_6 = arith.constant 0 : index
    %c0_7 = arith.constant 0 : index
    %10 = vector.load %arg4[%c0_6, %c0_7] : memref<128x256xbf16, #tpu.memory_space<vmem>>, vector<128x256xbf16>
    %cst_8 = arith.constant dense<0.000000e+00> : vector<8x256xf32>
    %11 = tpu.matmul %9, %10, %cst_8 {dimension_numbers = #tpu.dot_dimension_numbers<[1], [0], [0], [1], [0, 0, 1, 1], [], []>} : vector<8x128xbf16>, vector<128x256xbf16>, vector<8x256xf32> -> vector<8x256xf32>
    %c0_9 = arith.constant 0 : index
    %c0_10 = arith.constant 0 : index
    %12 = vector.load %arg5[%c0_9, %c0_10] : memref<1x256xf32, #tpu.memory_space<vmem>>, vector<1x256xf32>
    %13 = vector.broadcast %12 : vector<1x256xf32> to vector<8x256xf32>
    %14 = arith.addf %11, %13 : vector<8x256xf32>
    %15 = arith.negf %14 : vector<8x256xf32>
    %16 = math.exp %15 : vector<8x256xf32>
    %cst_11 = arith.constant 1.000000e+00 : f32
    %17 = vector.broadcast %cst_11 : f32 to vector<8x256xf32>
    %18 = arith.addf %17, %16 : vector<8x256xf32>
    %19 = arith.divf %17, %18 : vector<8x256xf32>
    %20 = arith.truncf %19 : vector<8x256xf32> to vector<8x256xbf16>
    %c0_12 = arith.constant 0 : index
    %c0_13 = arith.constant 0 : index
    %21 = vector.load %arg6[%c0_12, %c0_13] : memref<8x256xbf16, #tpu.memory_space<vmem>>, vector<8x256xbf16>
    tpu.vector_store %arg6[%c0_12, %c0_13], %20 {strides = array<i32>} : memref<8x256xbf16, #tpu.memory_space<vmem>>, vector<8x256xbf16>,
    return
  }
  func.func @transform_0(%arg0: i32) -> (i32, i32) {
    %c0_i32 = arith.constant 0 : i32
    %c0_i32_0 = arith.constant 0 : i32
    return %arg0, %c0_i32 : i32, i32
  }
  func.func @transform_1(%arg0: i32) -> (i32, i32) {
    %c0_i32 = arith.constant 0 : i32
    %c0_i32_0 = arith.constant 0 : i32
    %c0_i32_1 = arith.constant 0 : i32
    return %c0_i32, %c0_i32_0 : i32, i32
  }
  func.func @transform_2(%arg0: i32) -> (i32, i32) {
    %c0_i32 = arith.constant 0 : i32
    %c0_i32_0 = arith.constant 0 : i32
    %c0_i32_1 = arith.constant 0 : i32
    return %c0_i32, %c0_i32_0 : i32, i32
  }
  func.func @transform_3(%arg0: i32) -> (i32, i32) {
    %c0_i32 = arith.constant 0 : i32
    %c0_i32_0 = arith.constant 0 : i32
    %c0_i32_1 = arith.constant 0 : i32
    return %c0_i32, %c0_i32_0 : i32, i32
  }
  func.func @transform_4(%arg0: i32) -> (i32, i32) {
    %c0_i32 = arith.constant 0 : i32
    %c0_i32_0 = arith.constant 0 : i32
    %c0_i32_1 = arith.constant 0 : i32
    return %c0_i32, %c0_i32_0 : i32, i32
  }
  func.func @transform_5(%arg0: i32) -> (i32, i32) {
    %c0_i32 = arith.constant 0 : i32
    %c0_i32_0 = arith.constant 0 : i32
    return %arg0, %c0_i32 : i32, i32
  }
}

</mosaic_0001>

<llo_original>
// kernel: tpu_custom_call.1
$region0: #{tpu_custom_call.1}
  #allocation0 [shape = 'u32[]', space=smem, size = 0x4, offset = 0x4, fixed_abs, tag = 'smem constant byte address 0x4 - core index']
  #allocation1 [shape = 'u32[144,128]{1,0:T(1,128)}', space=vmem, size = 0x12000, scoped, tag = 'internal scratch']
  %s0 = inlined_call_operand.hbm [shape: f32[8,32], index: 0, kind: input, shape index: {}]
  %s1 = inlined_call_operand.hbm [shape: bf16[32,128], index: 1, kind: input, shape index: {}]
  %s2 = inlined_call_operand.vmem [shape: f32[1,128], index: 2, kind: input, shape index: {}]
  %s3 = inlined_call_operand.hbm [shape: bf16[128,256], index: 3, kind: input, shape index: {}]
  %s4 = inlined_call_operand.vmem [shape: f32[1,256], index: 4, kind: input, shape index: {}]
  %s5 = inlined_call_operand.hbm [shape: bf16[8,256], index: 5, kind: output, shape index: {}]
  %s6 = sld [smem:[#allocation0]]
  $region42: #{tpu_custom_call.1} parent=0
    _
  %s8 = ssub.s32 1, %s6
  %s9 = scalar_select 0, %s8, %s6
  $region1: #{tpu_custom_call.1} parent=0
    #allocation2 [shape = 'u8[4096]{0}', space=vmem, size = 0x1000, scoped, tag = 'input window, operand 0, single buffered']
    #allocation3 [shape = 's32[1]{0}', space=sflag, size = 0x4, scoped, tag = 'scoped memory for tpu_custom_call.1']
    #allocation4 [shape = 's32[1]{0}', space=sflag, size = 0x4, scoped, tag = 'scoped memory for tpu_custom_call.1']
    #allocation5 [shape = 'u8[8192]{0}', space=vmem, size = 0x2000, scoped, tag = 'input window, operand 1, single buffered']
    #allocation6 [shape = 's32[1]{0}', space=sflag, size = 0x4, scoped, tag = 'scoped memory for tpu_custom_call.1']
    #allocation7 [shape = 'u8[65536]{0}', space=vmem, size = 0x10000, scoped, tag = 'input window, operand 3, single buffered']
    #allocation8 [shape = 'u8[4096]{0}', space=vmem, size = 0x1000, scoped, tag = 'output window, operand 0, single buffered']
    %10 = vsyncpa [#allocation3], 0
    %11 = vsyncpa [#allocation6], 0
    %12 = vsyncpa [#allocation4], 0
    // Predicated region
    $region2: #{tpu_custom_call.1} parent=1 // pred_check
      _
    $region3: #{tpu_custom_call.1} parent=1 // pred_check_branch
      %14 = sbr.rel (0) target = $region5
    $region4: #{tpu_custom_call.1} parent=1 // pred_region
      %s16 = ssub.s32 128, 128
      %17 = vsyncadd [#allocation3], %s16
      %s19 = sshll.u32 [#allocation2], 4
      %s20 = int_to_ptr.vmem [resolvable:$true] %s19
      %22 = dma.hbm_to_vmem [thread:$0]  %s0, 128, %s20, [#allocation3]
    $region5: #{tpu_custom_call.1} parent=1 // pred_fallthru
      _
    // Predicated region
    $region6: #{tpu_custom_call.1} parent=1 // pred_check
      _
    $region7: #{tpu_custom_call.1} parent=1 // pred_check_branch
      %24 = sbr.rel (0) target = $region9
    $region8: #{tpu_custom_call.1} parent=1 // pred_region
      %s26 = ssub.s32 256, 256
      %27 = vsyncadd [#allocation6], %s26
      %s28 = sshll.u32 [#allocation5], 4
      %s29 = int_to_ptr.vmem [resolvable:$true] %s28
      %34 = dma.hbm_to_vmem [thread:$0]  %s1, 256, %s29, [#allocation6], 64, 64, 4
    $region9: #{tpu_custom_call.1} parent=1 // pred_fallthru
      _
    // Predicated region
    $region10: #{tpu_custom_call.1} parent=1 // pred_check
      _
    $region11: #{tpu_custom_call.1} parent=1 // pred_check_branch
      %36 = sbr.rel (0) target = $region13
    $region12: #{tpu_custom_call.1} parent=1 // pred_region
      _
    $region13: #{tpu_custom_call.1} parent=1 // pred_fallthru
      _
    // Predicated region
    $region14: #{tpu_custom_call.1} parent=1 // pred_check
      _
    $region15: #{tpu_custom_call.1} parent=1 // pred_check_branch
      %38 = sbr.rel (0) target = $region17
    $region16: #{tpu_custom_call.1} parent=1 // pred_region
      %s40 = ssub.s32 2048, 2048
      %41 = vsyncadd [#allocation6], %s40
      %s42 = sshll.u32 [#allocation7], 4
      %s43 = int_to_ptr.vmem [resolvable:$true] %s42
      %48 = dma.hbm_to_vmem [thread:$0]  %s3, 2048, %s43, [#allocation6], 128, 128, 8
    $region17: #{tpu_custom_call.1} parent=1 // pred_fallthru
      _
    // Predicated region
    $region18: #{tpu_custom_call.1} parent=1 // pred_check
      _
    $region19: #{tpu_custom_call.1} parent=1 // pred_check_branch
      %50 = sbr.rel (0) target = $region21
    $region20: #{tpu_custom_call.1} parent=1 // pred_region
      _
    $region21: #{tpu_custom_call.1} parent=1 // pred_fallthru
      _
    // Predicated region
    $region22: #{tpu_custom_call.1} parent=1 // pred_check
      _
    $region23: #{tpu_custom_call.1} parent=1 // pred_check_branch
      %52 = sbr.rel (0) target = $region25
    $region24: #{tpu_custom_call.1} parent=1 // pred_region
      %53 = dma.done [#allocation3], 128
    $region25: #{tpu_custom_call.1} parent=1 // pred_fallthru
      _
    // Predicated region
    $region26: #{tpu_custom_call.1} parent=1 // pred_check
      _
    $region27: #{tpu_custom_call.1} parent=1 // pred_check_branch
      %55 = sbr.rel (0) target = $region29
    $region28: #{tpu_custom_call.1} parent=1 // pred_region
      %56 = dma.done [#allocation6], 256
    $region29: #{tpu_custom_call.1} parent=1 // pred_fallthru
      _
    // Predicated region
    $region30: #{tpu_custom_call.1} parent=1 // pred_check
      _
    $region31: #{tpu_custom_call.1} parent=1 // pred_check_branch
      %58 = sbr.rel (0) target = $region33
    $region32: #{tpu_custom_call.1} parent=1 // pred_region
      %59 = dma.done [#allocation6], 2048
    $region33: #{tpu_custom_call.1} parent=1 // pred_fallthru
      _
    %v61 = vld [vmem:[#allocation2] sm:$0xff]
    %v62 = vpack.c.bf16 %v61, %v61
    %v63 = vld [vmem:[#allocation5] sm:$0xf]
    %v64 = vld [vmem:[#allocation5 + $0x4] sm:$0xf]
    %v65 = vld [vmem:[#allocation5 + $0x8] sm:$0xf]
    %v66 = vld [vmem:[#allocation5 + $0xc] sm:$0xf]
    %v67 = vld [vmem:[%s2] sm:$0x1]
    %v69 = vlaneseq
    %v70 = vshrl.u32 %v69, 7
    %v71 = vsub.s32 0, %v70
    %v72 = vrot.slane %v67, %v71
    %v78 = vunpack.c.l.b16 %v63
    %v79 = vunpack.c.l.b16 %v64
    %v80 = vunpack.c.l.b16 %v65
    %v81 = vunpack.c.l.b16 %v66
    %v82 = vpack.c.b16 %v79, %v78
    %v83 = vpack.c.b16 %v81, %v80
    %vm86 = vcmask 261120
    %v88 = vsel %vm86, %v62, 0
    %90 = vmatprep.subr.bf16.mxu0 0
    %91 = vmatpush1.bf16.msra.mxu0 0
    %92 = vmatprep.subr.bf16.mxu0 0
    %93 = vmatpush1.bf16.msra.mxu0 0
    %94 = vmatprep.subr.bf16.mxu0 0
    %95 = vmatpush1.bf16.msra.mxu0 0
    %96 = vmatprep.subr.bf16.mxu0 0
    %97 = vmatpush1.bf16.msra.mxu0 0
    %98 = vmatprep.subr.bf16.mxu0 0
    %99 = vmatpush1.bf16.msra.mxu0 0
    %100 = vmatprep.subr.bf16.mxu0 0
    %101 = vmatpush1.bf16.msra.mxu0 0
    %102 = vmatprep.subr.bf16.mxu0 0
    %103 = vmatpush1.bf16.msra.mxu0 %v83
    %104 = vmatprep.subr.bf16.mxu0 0
    %105 = vmatpush1.bf16.msra.mxu0 %v82
    %106 = vmatprep.subr.bf16.mxu0 0
    %107 = vmatpush2.bf16.msra.mxu0 0
    %108 = vmatprep.subr.bf16.mxu0 0
    %109 = vmatpush2.bf16.msra.mxu0 0
    %110 = vmatprep.subr.bf16.mxu0 0
    %111 = vmatpush2.bf16.msra.mxu0 0
    %112 = vmatprep.subr.bf16.mxu0 0
    %113 = vmatpush2.bf16.msra.mxu0 0
    %114 = vmatprep.subr.bf16.mxu0 0
    %115 = vmatpush2.bf16.msra.mxu0 0
    %116 = vmatprep.subr.bf16.mxu0 0
    %117 = vmatpush2.bf16.msra.mxu0 0
    %118 = vmatprep.subr.bf16.mxu0 0
    %119 = vmatpush2.bf16.msra.mxu0 0
    %120 = vmatprep.subr.bf16.mxu0 0
    %121 = vmatpush2.bf16.msra.mxu0 0
    %122 = vmatprep.mubr.bf16.mxu0 0
    %123 = vmatmul.mubr.bf16.gmra.mxu0 %v88
    %v124 = vpop.f32.mrf.mxu0
    %v125 = vadd.f32 %v72, %v124
    %v126 = vpop.f32.mrf.mxu0
    %v127 = vpop.f32.mrf.mxu0
    %v128 = vpop.f32.mrf.mxu0
    %129 = vdwg.mxu0
    %v130 = vmax.f32 %v125, 0.0
    %v131 = vpack.c.bf16 %v130, %v130
    %v132 = vld [vmem:[#allocation7] sm:$0xff]
    %v133 = vld [vmem:[#allocation7 + $0x8] sm:$0xff]
    %v134 = vld [vmem:[#allocation7 + $0x10] sm:$0xff]
    %v135 = vld [vmem:[#allocation7 + $0x18] sm:$0xff]
    %v136 = vld [vmem:[#allocation7 + $0x20] sm:$0xff]
    %v137 = vld [vmem:[#allocation7 + $0x28] sm:$0xff]
    %v138 = vld [vmem:[#allocation7 + $0x30] sm:$0xff]
    %v139 = vld [vmem:[#allocation7 + $0x38] sm:$0xff]
    %v140 = vld [vmem:[#allocation7 + $0x40] sm:$0xff]
    %v141 = vld [vmem:[#allocation7 + $0x48] sm:$0xff]
    %v142 = vld [vmem:[#allocation7 + $0x50] sm:$0xff]
    %v143 = vld [vmem:[#allocation7 + $0x58] sm:$0xff]
    %v144 = vld [vmem:[#allocation7 + $0x60] sm:$0xff]
    %v145 = vld [vmem:[#allocation7 + $0x68] sm:$0xff]
    %v146 = vld [vmem:[#allocation7 + $0x70] sm:$0xff]
    %v147 = vld [vmem:[#allocation7 + $0x78] sm:$0xff]
    %v148 = vld [vmem:[%s4] sm:$0x3]
    %v150 = vlaneseq
    %v151 = vshrl.u32 %v150, 7
    %v152 = vsub.s32 0, %v151
    %v153 = vrot.slane %v148, %v152
    %v154 = vlaneseq
    %v155 = vshrl.u32 %v154, 7
    %v156 = vsub.s32 1, %v155
    %v157 = vrot.slane %v148, %v156
    %v176 = vunpack.c.l.b16 %v132
    %v177 = vunpack.c.h.b16 %v132
    %v178 = vunpack.c.l.b16 %v133
    %v179 = vunpack.c.h.b16 %v133
    %v180 = vunpack.c.l.b16 %v134
    %v181 = vunpack.c.h.b16 %v134
    %v182 = vunpack.c.l.b16 %v135
    %v183 = vunpack.c.h.b16 %v135
    %v184 = vunpack.c.l.b16 %v136
    %v185 = vunpack.c.h.b16 %v136
    %v186 = vunpack.c.l.b16 %v137
    %v187 = vunpack.c.h.b16 %v137
    %v188 = vunpack.c.l.b16 %v138
    %v189 = vunpack.c.h.b16 %v138
    %v190 = vunpack.c.l.b16 %v139
    %v191 = vunpack.c.h.b16 %v139
    %v192 = vunpack.c.l.b16 %v140
    %v193 = vunpack.c.h.b16 %v140
    %v194 = vunpack.c.l.b16 %v141
    %v195 = vunpack.c.h.b16 %v141
    %v196 = vunpack.c.l.b16 %v142
    %v197 = vunpack.c.h.b16 %v142
    %v198 = vunpack.c.l.b16 %v143
    %v199 = vunpack.c.h.b16 %v143
    %v200 = vunpack.c.l.b16 %v144
    %v201 = vunpack.c.h.b16 %v144
    %v202 = vunpack.c.l.b16 %v145
    %v203 = vunpack.c.h.b16 %v145
    %v204 = vunpack.c.l.b16 %v146
    %v205 = vunpack.c.h.b16 %v146
    %v206 = vunpack.c.l.b16 %v147
    %v207 = vunpack.c.h.b16 %v147
    %v208 = vpack.c.b16 %v178, %v176
    %v209 = vpack.c.b16 %v179, %v177
    %v210 = vpack.c.b16 %v182, %v180
    %v211 = vpack.c.b16 %v183, %v181
    %v212 = vpack.c.b16 %v186, %v184
    %v213 = vpack.c.b16 %v187, %v185
    %v214 = vpack.c.b16 %v190, %v188
    %v215 = vpack.c.b16 %v191, %v189
    %v216 = vpack.c.b16 %v194, %v192
    %v217 = vpack.c.b16 %v195, %v193
    %v218 = vpack.c.b16 %v198, %v196
    %v219 = vpack.c.b16 %v199, %v197
    %v220 = vpack.c.b16 %v202, %v200
    %v221 = vpack.c.b16 %v203, %v201
    %v222 = vpack.c.b16 %v206, %v204
    %v223 = vpack.c.b16 %v207, %v205
    %240 = vmatprep.subr.bf16.mxu0 %v223
    %241 = vmatpush1.bf16.msra.mxu0 %v222
    %242 = vmatprep.subr.bf16.mxu0 %v221
    %243 = vmatpush1.bf16.msra.mxu0 %v220
    %244 = vmatprep.subr.bf16.mxu0 %v219
    %245 = vmatpush1.bf16.msra.mxu0 %v218
    %246 = vmatprep.subr.bf16.mxu0 %v217
    %247 = vmatpush1.bf16.msra.mxu0 %v216
    %248 = vmatprep.subr.bf16.mxu0 %v215
    %249 = vmatpush1.bf16.msra.mxu0 %v214
    %250 = vmatprep.subr.bf16.mxu0 %v213
    %251 = vmatpush1.bf16.msra.mxu0 %v212
    %252 = vmatprep.subr.bf16.mxu0 %v211
    %253 = vmatpush1.bf16.msra.mxu0 %v210
    %254 = vmatprep.subr.bf16.mxu0 %v209
    %255 = vmatpush1.bf16.msra.mxu0 %v208
    %256 = vmatprep.subr.bf16.mxu0 0
    %257 = vmatpush2.bf16.msra.mxu0 0
    %258 = vmatprep.subr.bf16.mxu0 0
    %259 = vmatpush2.bf16.msra.mxu0 0
    %260 = vmatprep.subr.bf16.mxu0 0
    %261 = vmatpush2.bf16.msra.mxu0 0
    %262 = vmatprep.subr.bf16.mxu0 0
    %263 = vmatpush2.bf16.msra.mxu0 0
    %264 = vmatprep.subr.bf16.mxu0 0
    %265 = vmatpush2.bf16.msra.mxu0 0
    %266 = vmatprep.subr.bf16.mxu0 0
    %267 = vmatpush2.bf16.msra.mxu0 0
    %268 = vmatprep.subr.bf16.mxu0 0
    %269 = vmatpush2.bf16.msra.mxu0 0
    %270 = vmatprep.subr.bf16.mxu0 0
    %271 = vmatpush2.bf16.msra.mxu0 0
    %272 = vmatprep.mubr.bf16.mxu0 0
    %273 = vmatmul.mubr.bf16.gmra.mxu0 %v131
    %v274 = vpop.f32.mrf.mxu0
    %v275 = vadd.f32 %v153, %v274
    %v276 = vpop.f32.mrf.mxu0
    %v277 = vadd.f32 %v157, %v276
    %v278 = vpop.f32.mrf.mxu0
    %v279 = vpop.f32.mrf.mxu0
    %280 = vdwg.mxu0
    %v281 = vxor.u32 %v275, 2147483648
    %v282 = vxor.u32 %v277, 2147483648
    %v283 = vmul.f32 %v281, 1.442695
    %v284 = vpow.pop %v283
    %v285 = vmul.f32 %v282, 1.442695
    %v286 = vpow.pop %v285
    %v287 = vadd.f32 %v284, 1.0
    %v288 = vadd.f32 %v286, 1.0
    %v289 = vrcp.pop %v287
    %v290 = vmul.f32 1.0, %v289
    %v291 = vrcp.pop %v288
    %v292 = vmul.f32 1.0, %v291
    %v293 = vpack.c.bf16 %v290, %v290
    %v294 = vpack.c.bf16 %v292, %v292
    %v297 = vunpack.c.l.b16 %v293
    %v298 = vunpack.c.l.b16 %v294
    %v299 = vpack.c.b16 %v298, %v297
    %301 = vst [vmem:[#allocation8] sm:$0xff] %v299
    // Predicated region
    $region34: #{tpu_custom_call.1} parent=1 // pred_check
      _
    $region35: #{tpu_custom_call.1} parent=1 // pred_check_branch
      %303 = sbr.rel (0) target = $region37
    $region36: #{tpu_custom_call.1} parent=1 // pred_region
      %s305 = ssub.s32 128, 128
      %306 = vsyncadd [#allocation4], %s305
      %s308 = sshll.u32 [#allocation8], 4
      %s309 = int_to_ptr.vmem [resolvable:$true] %s308
      %311 = dma.vmem_to_hbm [thread:$0]  %s309, 128, %s5, [#allocation4]
    $region37: #{tpu_custom_call.1} parent=1 // pred_fallthru
      _
    // Predicated region
    $region38: #{tpu_custom_call.1} parent=1 // pred_check
      _
    $region39: #{tpu_custom_call.1} parent=1 // pred_check_branch
      %313 = sbr.rel (0) target = $region41
    $region40: #{tpu_custom_call.1} parent=1 // pred_region
      %314 = dma.done [#allocation4], 128
    $region41: #{tpu_custom_call.1} parent=1 // pred_fallthru
      _
    %315 = vsyncpa [#allocation3], 1
    %316 = vsyncpa [#allocation6], 1
    %317 = vsyncpa [#allocation4], 1

</llo_original>
